<compile_context>
chip_gen: v5e
topology: v5e:2x2
jax: 0.10.0
libtpu: 0.0.40
codegen_flags: <defaults>
</compile_context>

<pallas_src>
import functools

import jax
import jax.numpy as jnp
from jax.experimental import pallas as pl
from jax.experimental.pallas import tpu as pltpu

_SUBLANE = 8  # f32 sublane packing (second-to-last dim alignment)


def _round_up(x, m):
    return ((x + m - 1) // m) * m


def generator_kernel(z_ref, w1_ref, b1_ref, w2_ref, b2_ref, out_ref):
    # Cast the streamed activation tile to the (pre-cast) weight dtype in-kernel
    # so bf16-prepared weights hit the native bf16 MXU path while z keeps its
    # narrow/native HBM footprint. f32 accumulation + f32 epilogue throughout.
    z = z_ref[...].astype(w1_ref.dtype)
    h = jnp.dot(z, w1_ref[...], preferred_element_type=jnp.float32)
    h = jnp.maximum(h + b1_ref[...], 0.0)                      # bias + ReLU (VPU, f32)
    o = jnp.dot(h.astype(w2_ref.dtype), w2_ref[...],
                preferred_element_type=jnp.float32)
    out_ref[...] = (o + b2_ref[...]).astype(out_ref.dtype)


def prepare_params(w1, b1, w2, b2, compute_dtype=jnp.bfloat16):
    """One-time parameter prep, hoisted out of the per-call hot path.

    Weights are expected in (in, out) layout. They are cast to `compute_dtype`
    (bf16 default: native MXU operand dtype on v5e/v6e/v7x, halves weight HBM
    bytes). Biases are kept f32 for the f32 bias+ReLU epilogue.
    """
    return (jnp.asarray(w1, compute_dtype),
            jnp.asarray(b1, jnp.float32).reshape(1, -1),
            jnp.asarray(w2, compute_dtype),
            jnp.asarray(b2, jnp.float32).reshape(1, -1))


@functools.partial(jax.jit, static_argnames=("block_b", "vmem_budget_bytes"))
def generator_forward(z, w1, b1, w2, b2, *, block_b=2048,
                      vmem_budget_bytes=24 * 1024 * 1024):
    """z: (B, latent); w1: (latent, hidden); b1: (1, hidden);
       w2: (hidden, out); b2: (1, out)  ->  (B, out)."""
    B, latent = z.shape
    hidden = w1.shape[1]
    out_dim = w2.shape[1]
    out_dtype = z.dtype

    z_item = jnp.dtype(z.dtype).itemsize
    w_item = jnp.dtype(w1.dtype).itemsize
    o_item = jnp.dtype(out_dtype).itemsize

    # ---- batch tile: sublane-aligned, sized under a VMEM budget ------------
    # Per-row footprint: double-buffered z and out tiles plus the f32 hidden
    # activation / matmul intermediates. Weights are counted once (resident,
    # double-buffered by the pipeline -> 2x).
    per_row = (2 * (latent * z_item + out_dim * o_item)
               + 4 * (hidden + latent + out_dim))
    weight_bytes = ((latent * hidden + hidden * out_dim) * w_item
                    + (hidden + out_dim) * 4)
    budget = max(vmem_budget_bytes - 2 * weight_bytes, _SUBLANE * per_row)
    tb = min(block_b, max(_SUBLANE, budget // per_row), _round_up(B, _SUBLANE))
    tb = _round_up(tb, _SUBLANE)

    grid = (pl.cdiv(B, tb),)

    cost = pl.CostEstimate(
        flops=2 * B * (latent * hidden + hidden * out_dim),
        transcendentals=0,
        bytes_accessed=(B * latent * z_item
                        + (latent * hidden + hidden * out_dim) * w_item
                        + (hidden + out_dim) * 4
                        + B * out_dim * o_item),
    )

    return pl.pallas_call(
        generator_kernel,
        out_shape=jax.ShapeDtypeStruct((B, out_dim), out_dtype),
        grid_spec=pl.GridSpec(
            grid=grid,
            in_specs=[
                # z streamed over the batch (double-buffered across grid steps)
                pl.BlockSpec((tb, latent), lambda i: (i, 0)),
                # weights / biases resident in VMEM (constant block index)
                pl.BlockSpec((latent, hidden), lambda i: (0, 0)),
                pl.BlockSpec((1, hidden), lambda i: (0, 0)),
                pl.BlockSpec((hidden, out_dim), lambda i: (0, 0)),
                pl.BlockSpec((1, out_dim), lambda i: (0, 0)),
            ],
            out_specs=pl.BlockSpec((tb, out_dim), lambda i: (i, 0)),
        ),
        compiler_params=pltpu.CompilerParams(
            dimension_semantics=("parallel",),
            vmem_limit_bytes=max(vmem_budget_bytes + (8 << 20), 32 << 20),
        ),
        cost_estimate=cost,
    )(z, w1, b1, w2, b2)


def init_params(key, latent_dim, output_dim, hidden_dim=128, dtype=jnp.float32):
    """Deterministic init mirroring nn.Linear shapes (stored as (in, out))."""
    k1, k2, k3, k4 = jax.random.split(key, 4)
    lim1 = 1.0 / jnp.sqrt(latent_dim)
    lim2 = 1.0 / jnp.sqrt(hidden_dim)
    w1 = jax.random.uniform(k1, (latent_dim, hidden_dim), dtype, -lim1, lim1)
    b1 = jax.random.uniform(k2, (1, hidden_dim), dtype, -lim1, lim1)
    w2 = jax.random.uniform(k3, (hidden_dim, output_dim), dtype, -lim2, lim2)
    b2 = jax.random.uniform(k4, (1, output_dim), dtype, -lim2, lim2)
    return w1, b1, w2, b2


if __name__ == "__main__":
    # Small shapes consistent with the module: z is (batch, latent_dim).
    batch, latent_dim, hidden_dim, output_dim = 8, 16, 32, 16

    key = jax.random.PRNGKey(0)
    kz, kp, kz2 = jax.random.split(key, 3)
    z = jax.random.normal(kz, (batch, latent_dim), jnp.float32)
    w1, b1, w2, b2 = init_params(kp, latent_dim, output_dim, hidden_dim)

    # Plain-JAX reference (same math as the PyTorch Sequential).
    ref = jnp.maximum(z @ w1 + b1, 0.0) @ w2 + b2

    # f32-operand path: tight numerical check.
    p32 = prepare_params(w1, b1, w2, b2, compute_dtype=jnp.float32)
    out32 = jax.block_until_ready(generator_forward(z, *p32))
    assert out32.shape == (batch, output_dim)
    assert jnp.allclose(out32, ref, atol=1e-5, rtol=1e-5)

    # Recommended bf16-operand path (f32 accumulation): looser tolerance.
    pbf = prepare_params(w1, b1, w2, b2)  # bf16 weights
    outbf = jax.block_until_ready(generator_forward(z, *pbf))
    assert outbf.shape == (batch, output_dim)
    assert jnp.allclose(outbf, ref, atol=5e-2, rtol=5e-2)

    # Ragged batch + multi-step grid (cdiv grid, partial last tile).
    B2 = 200
    z2 = jax.random.normal(kz2, (B2, latent_dim), jnp.float32)
    ref2 = jnp.maximum(z2 @ w1 + b1, 0.0) @ w2 + b2
    out2 = jax.block_until_ready(generator_forward(z2, *p32, block_b=64))
    assert out2.shape == (B2, output_dim)
    assert jnp.allclose(out2, ref2, atol=1e-5, rtol=1e-5)

    print("KERNEL_OK")
</pallas_src>

<mosaic_0001>
module attributes {stable_mosaic.version = 11 : i64} {
  func.func @generator_kernel(%arg0: i32, %arg1: memref<8x16xf32, #tpu.memory_space<vmem>>, %arg2: memref<16x32xf32, #tpu.memory_space<vmem>>, %arg3: memref<1x32xf32, #tpu.memory_space<vmem>>, %arg4: memref<32x16xf32, #tpu.memory_space<vmem>>, %arg5: memref<1x16xf32, #tpu.memory_space<vmem>>, %arg6: memref<8x16xf32, #tpu.memory_space<vmem>>) attributes {dimension_semantics = [#tpu.dimension_semantics<parallel>], iteration_bounds = array<i64: 1>, scalar_prefetch = 0 : i64, scratch_operands = 0 : i64, tpu.core_type = #tpu.core_type<tc>, window_params = [{transform_indices = @transform_0, window_bounds = array<i64: 8, 16>}, {pipeline_mode = #tpu.pipeline_mode<synchronous>, transform_indices = @transform_1, window_bounds = array<i64: 16, 32>}, {pipeline_mode = #tpu.pipeline_mode<synchronous>, transform_indices = @transform_2, window_bounds = array<i64: 1, 32>}, {pipeline_mode = #tpu.pipeline_mode<synchronous>, transform_indices = @transform_3, window_bounds = array<i64: 32, 16>}, {pipeline_mode = #tpu.pipeline_mode<synchronous>, transform_indices = @transform_4, window_bounds = array<i64: 1, 16>}, {transform_indices = @transform_5, window_bounds = array<i64: 8, 16>}]} {
    %c0 = arith.constant 0 : index
    %c0_0 = arith.constant 0 : index
    %0 = vector.load %arg1[%c0, %c0_0] : memref<8x16xf32, #tpu.memory_space<vmem>>, vector<8x16xf32>
    %c0_1 = arith.constant 0 : index
    %c0_2 = arith.constant 0 : index
    %1 = vector.load %arg2[%c0_1, %c0_2] : memref<16x32xf32, #tpu.memory_space<vmem>>, vector<16x32xf32>
    %cst = arith.constant dense<0.000000e+00> : vector<8x32xf32>
    %2 = tpu.matmul %0, %1, %cst {dimension_numbers = #tpu.dot_dimension_numbers<[1], [0], [0], [1], [0, 0, 1, 1], [], []>} : vector<8x16xf32>, vector<16x32xf32>, vector<8x32xf32> -> vector<8x32xf32>
    %c0_3 = arith.constant 0 : index
    %c0_4 = arith.constant 0 : index
    %3 = vector.load %arg3[%c0_3, %c0_4] : memref<1x32xf32, #tpu.memory_space<vmem>>, vector<1x32xf32>
    %4 = vector.broadcast %3 : vector<1x32xf32> to vector<8x32xf32>
    %5 = arith.addf %2, %4 : vector<8x32xf32>
    %cst_5 = arith.constant 0.000000e+00 : f32
    %6 = vector.broadcast %cst_5 : f32 to vector<8x32xf32>
    %7 = arith.maximumf %5, %6 : vector<8x32xf32>
    %c0_6 = arith.constant 0 : index
    %c0_7 = arith.constant 0 : index
    %8 = vector.load %arg4[%c0_6, %c0_7] : memref<32x16xf32, #tpu.memory_space<vmem>>, vector<32x16xf32>
    %cst_8 = arith.constant dense<0.000000e+00> : vector<8x16xf32>
    %9 = tpu.matmul %7, %8, %cst_8 {dimension_numbers = #tpu.dot_dimension_numbers<[1], [0], [0], [1], [0, 0, 1, 1], [], []>} : vector<8x32xf32>, vector<32x16xf32>, vector<8x16xf32> -> vector<8x16xf32>
    %c0_9 = arith.constant 0 : index
    %c0_10 = arith.constant 0 : index
    %10 = vector.load %arg5[%c0_9, %c0_10] : memref<1x16xf32, #tpu.memory_space<vmem>>, vector<1x16xf32>
    %11 = vector.broadcast %10 : vector<1x16xf32> to vector<8x16xf32>
    %12 = arith.addf %9, %11 : vector<8x16xf32>
    %c0_11 = arith.constant 0 : index
    %c0_12 = arith.constant 0 : index
    %13 = vector.load %arg6[%c0_11, %c0_12] : memref<8x16xf32, #tpu.memory_space<vmem>>, vector<8x16xf32>
    tpu.vector_store %arg6[%c0_11, %c0_12], %12 {strides = array<i32>} : memref<8x16xf32, #tpu.memory_space<vmem>>, vector<8x16xf32>,
    return
  }
  func.func @transform_0(%arg0: i32) -> (i32, i32) {
    %c0_i32 = arith.constant 0 : i32
    %c0_i32_0 = arith.constant 0 : i32
    return %arg0, %c0_i32 : i32, i32
  }
  func.func @transform_1(%arg0: i32) -> (i32, i32) {
    %c0_i32 = arith.constant 0 : i32
    %c0_i32_0 = arith.constant 0 : i32
    %c0_i32_1 = arith.constant 0 : i32
    return %c0_i32, %c0_i32_0 : i32, i32
  }
  func.func @transform_2(%arg0: i32) -> (i32, i32) {
    %c0_i32 = arith.constant 0 : i32
    %c0_i32_0 = arith.constant 0 : i32
    %c0_i32_1 = arith.constant 0 : i32
    return %c0_i32, %c0_i32_0 : i32, i32
  }
  func.func @transform_3(%arg0: i32) -> (i32, i32) {
    %c0_i32 = arith.constant 0 : i32
    %c0_i32_0 = arith.constant 0 : i32
    %c0_i32_1 = arith.constant 0 : i32
    return %c0_i32, %c0_i32_0 : i32, i32
  }
  func.func @transform_4(%arg0: i32) -> (i32, i32) {
    %c0_i32 = arith.constant 0 : i32
    %c0_i32_0 = arith.constant 0 : i32
    %c0_i32_1 = arith.constant 0 : i32
    return %c0_i32, %c0_i32_0 : i32, i32
  }
  func.func @transform_5(%arg0: i32) -> (i32, i32) {
    %c0_i32 = arith.constant 0 : i32
    %c0_i32_0 = arith.constant 0 : i32
    return %arg0, %c0_i32 : i32, i32
  }
}

</mosaic_0001>

<llo_original>
// kernel: generator_forward.1
$region0: #{generator_forward.1}
  #allocation0 [shape = 'u32[]', space=smem, size = 0x4, offset = 0x4, fixed_abs, tag = 'smem constant byte address 0x4 - core index']
  #allocation1 [shape = 'u32[72,128]{1,0:T(1,128)}', space=vmem, size = 0x9000, scoped, tag = 'internal scratch']
  %s0 = inlined_call_operand.vmem [shape: f32[8,16], index: 0, kind: input, shape index: {}]
  %s1 = inlined_call_operand.vmem [shape: f32[16,32], index: 1, kind: input, shape index: {}]
  %s2 = inlined_call_operand.vmem [shape: f32[1,32], index: 2, kind: input, shape index: {}]
  %s3 = inlined_call_operand.vmem [shape: f32[32,16], index: 3, kind: input, shape index: {}]
  %s4 = inlined_call_operand.vmem [shape: f32[1,16], index: 4, kind: input, shape index: {}]
  %s5 = inlined_call_operand.hbm [shape: f32[8,16], index: 5, kind: output, shape index: {}]
  %s6 = sld [smem:[#allocation0]]
  $region30: #{generator_forward.1} parent=0
    _
  %s8 = ssub.s32 1, %s6
  %s9 = scalar_select 0, %s8, %s6
  $region1: #{generator_forward.1} parent=0
    #allocation2 [shape = 'u8[4096]{0}', space=vmem, size = 0x1000, scoped, tag = 'output window, operand 0, single buffered']
    #allocation3 [shape = 's32[1]{0}', space=sflag, size = 0x4, scoped, tag = 'scoped memory for generator_forward.1']
    %10 = vsyncpa [#allocation3], 0
    // Predicated region
    $region2: #{generator_forward.1} parent=1 // pred_check
      _
    $region3: #{generator_forward.1} parent=1 // pred_check_branch
      %12 = sbr.rel (0) target = $region5
    $region4: #{generator_forward.1} parent=1 // pred_region
      _
    $region5: #{generator_forward.1} parent=1 // pred_fallthru
      _
    // Predicated region
    $region6: #{generator_forward.1} parent=1 // pred_check
      _
    $region7: #{generator_forward.1} parent=1 // pred_check_branch
      %14 = sbr.rel (0) target = $region9
    $region8: #{generator_forward.1} parent=1 // pred_region
      _
    $region9: #{generator_forward.1} parent=1 // pred_fallthru
      _
    // Predicated region
    $region10: #{generator_forward.1} parent=1 // pred_check
      _
    $region11: #{generator_forward.1} parent=1 // pred_check_branch
      %16 = sbr.rel (0) target = $region13
    $region12: #{generator_forward.1} parent=1 // pred_region
      _
    $region13: #{generator_forward.1} parent=1 // pred_fallthru
      _
    // Predicated region
    $region14: #{generator_forward.1} parent=1 // pred_check
      _
    $region15: #{generator_forward.1} parent=1 // pred_check_branch
      %18 = sbr.rel (0) target = $region17
    $region16: #{generator_forward.1} parent=1 // pred_region
      _
    $region17: #{generator_forward.1} parent=1 // pred_fallthru
      _
    // Predicated region
    $region18: #{generator_forward.1} parent=1 // pred_check
      _
    $region19: #{generator_forward.1} parent=1 // pred_check_branch
      %20 = sbr.rel (0) target = $region21
    $region20: #{generator_forward.1} parent=1 // pred_region
      _
    $region21: #{generator_forward.1} parent=1 // pred_fallthru
      _
    %v21 = vld [vmem:[%s0] sm:$0xff]
    %v22 = vld [vmem:[%s1] sm:$0xff]
    %v23 = vld [vmem:[%s1 + $0x8] sm:$0xff]
    %v24 = vld [vmem:[%s2] sm:$0x1]
    %v26 = vperm.slane %v24, 0
    %vm28 = vcmask 130048
    %v30 = vsel %vm28, %v21, 0
    %32 = vmatpush.msra.mxu0 0.0
    %33 = vmatpush.msra.mxu0 0.0
    %34 = vmatpush.msra.mxu0 0.0
    %35 = vmatpush.msra.mxu0 0.0
    %36 = vmatpush.msra.mxu0 0.0
    %37 = vmatpush.msra.mxu0 0.0
    %38 = vmatpush.msra.mxu0 0.0
    %39 = vmatpush.msra.mxu0 0.0
    %40 = vmatpush.msra.mxu0 0.0
    %41 = vmatpush.msra.mxu0 0.0
    %42 = vmatpush.msra.mxu0 0.0
    %43 = vmatpush.msra.mxu0 0.0
    %44 = vmatpush.msra.mxu0 0.0
    %45 = vmatpush.msra.mxu0 0.0
    %46 = vmatpush.msra.mxu0 %v23
    %47 = vmatpush.msra.mxu0 %v22
    %48 = vmatmul.f32.gmra.mxu0 %v30
    %v49 = vpop.f32.mrf.mxu0
    %v50 = vadd.f32 %v26, %v49
    %51 = vdwg.mxu0
    %v52 = vmax.f32 %v50, 0.0
    %v53 = vld [vmem:[%s3] sm:$0xff]
    %v54 = vld [vmem:[%s3 + $0x8] sm:$0xff]
    %v55 = vld [vmem:[%s3 + $0x10] sm:$0xff]
    %v56 = vld [vmem:[%s3 + $0x18] sm:$0xff]
    %v57 = vld [vmem:[%s4] sm:$0x1]
    %v59 = vperm.slane %v57, 0
    %vm61 = vcmask 261120
    %v63 = vsel %vm61, %v52, 0
    %65 = vmatpush.msra.mxu0 0.0
    %66 = vmatpush.msra.mxu0 0.0
    %67 = vmatpush.msra.mxu0 0.0
    %68 = vmatpush.msra.mxu0 0.0
    %69 = vmatpush.msra.mxu0 0.0
    %70 = vmatpush.msra.mxu0 0.0
    %71 = vmatpush.msra.mxu0 0.0
    %72 = vmatpush.msra.mxu0 0.0
    %73 = vmatpush.msra.mxu0 0.0
    %74 = vmatpush.msra.mxu0 0.0
    %75 = vmatpush.msra.mxu0 0.0
    %76 = vmatpush.msra.mxu0 0.0
    %77 = vmatpush.msra.mxu0 %v56
    %78 = vmatpush.msra.mxu0 %v55
    %79 = vmatpush.msra.mxu0 %v54
    %80 = vmatpush.msra.mxu0 %v53
    %81 = vmatmul.f32.gmra.mxu0 %v63
    %v82 = vpop.f32.mrf.mxu0
    %v83 = vadd.f32 %v59, %v82
    %84 = vdwg.mxu0
    %85 = vst.msk [vmem:[#allocation2] sm:$0xff] %vm28, %v83
    // Predicated region
    $region22: #{generator_forward.1} parent=1 // pred_check
      _
    $region23: #{generator_forward.1} parent=1 // pred_check_branch
      %87 = sbr.rel (0) target = $region25
    $region24: #{generator_forward.1} parent=1 // pred_region
      %89 = vsyncadd [#allocation3], 0
      %s91 = sshll.u32 [#allocation2], 4
      %s92 = int_to_ptr.vmem [resolvable:$true] %s91
      %s93 = sshll.u32 %s5, 4
      %s94 = int_to_ptr.hbm [resolvable:$true] %s93
      %96 = dma.vmem_to_hbm [thread:$0]  %s92, 128, %s94, [#allocation3]
    $region25: #{generator_forward.1} parent=1 // pred_fallthru
      _
    // Predicated region
    $region26: #{generator_forward.1} parent=1 // pred_check
      _
    $region27: #{generator_forward.1} parent=1 // pred_check_branch
      %98 = sbr.rel (0) target = $region29
    $region28: #{generator_forward.1} parent=1 // pred_region
      %100 = dma.done [#allocation3], 128
    $region29: #{generator_forward.1} parent=1 // pred_fallthru
      _
    %101 = vsyncpa [#allocation3], 1

</llo_original>
